<compile_context>
chip_gen: v5e
topology: v5e:2x2
jax: 0.10.0
libtpu: 0.0.40
codegen_flags: <defaults>
</compile_context>

<pallas_src>
import jax
import jax.numpy as jnp
from jax import lax
from jax.experimental import pallas as pl
from jax.experimental.pallas import tpu as pltpu

# ----------------------------- problem sizes ------------------------------
B_GRAPHS  = 8      # graphs / timesteps processed per pallas_call
N_NODES   = 16     # number of graph nodes
C_IN      = 8      # in_channel
C_OUT     = 32     # out_channel (== embedding dim, required by GraphLayer)
HEADS     = 1      # heads (GNNLayer default)
LANE      = 128    # lane width used for the lane-dense output slab
BN_EPS    = 1e-5
NEG_SLOPE = 0.2


def gnn_layer_kernel(x_ref, w_ref, emb_ref, pp_ref, adj_ref, out_ref):
    x   = x_ref[0]           # [N, Cin]    (one graph of the batch)
    w   = w_ref[...]         # [Cin, H*Cout]
    emb = emb_ref[...]       # [N, Cout]
    adj = adj_ref[...]       # [N, N]   adj[i, j] = 1 iff edge j -> i (incl. self-loops)
    pp  = pp_ref[...]        # [8, 128] packed parameter slab

    n = x.shape[0]

    # Packed-parameter slab layout (rows):
    #   row h          : [att_i[h]    | att_em_i[h]] in lanes 0:2*C_OUT
    #   row HEADS + h  : [att_j[h]    | att_em_j[h]] in lanes 0:2*C_OUT
    #   row 2*HEADS    : bias   (lanes 0:C_OUT)
    #   row 2*HEADS+1  : gamma
    #   row 2*HEADS+2  : beta
    bias  = pp[2 * HEADS    :2 * HEADS + 1, 0:C_OUT]     # [1, Cout]
    gamma = pp[2 * HEADS + 1:2 * HEADS + 2, 0:C_OUT]
    beta  = pp[2 * HEADS + 2:2 * HEADS + 3, 0:C_OUT]

    # Linear projection on the MXU.
    xw = jnp.dot(x, w, preferred_element_type=jnp.float32)      # [N, H*Cout]

    acc = jnp.zeros((n, C_OUT), jnp.float32)
    for h in range(HEADS):                                       # static (HEADS == 1)
        xh = xw[:, h * C_OUT:(h + 1) * C_OUT]                    # [N, Cout]
        feat = jnp.concatenate([xh, emb], axis=-1)               # [N, 2*Cout]

        a_i_vec = pp[h:h + 1, 0:2 * C_OUT]                       # [1, 2*Cout]
        a_j_vec = pp[HEADS + h:HEADS + h + 1, 0:2 * C_OUT]       # [1, 2*Cout]

        # Per-node attention scalars as MXU contractions (no XLU reduces),
        # s_j produced directly in row orientation (no transpose).
        s_i = lax.dot_general(feat, a_i_vec, (((1,), (1,)), ((), ())),
                              preferred_element_type=jnp.float32)   # [N, 1]
        s_j = lax.dot_general(a_j_vec, feat, (((1,), (1,)), ((), ())),
                              preferred_element_type=jnp.float32)   # [1, N]

        # logits[i, j] = s_i[i] + s_j[j], then LeakyReLU(0.2).
        logits = s_i + s_j                                        # [N, N]
        logits = jnp.where(logits > 0, logits, NEG_SLOPE * logits)

        # Row-wise softmax over incoming edges: unmasked row max is safe
        # (exp <= 1 everywhere) and the multiplicative adj mask zeroes
        # non-edges; every row holds at least its self-loop.
        m = jnp.max(logits, axis=-1, keepdims=True)
        p = jnp.exp(logits - m) * adj
        denom = jnp.sum(p, axis=-1, keepdims=True)
        alpha = p * pl.reciprocal(denom, approx=True)             # EUP vrcp

        # Weighted aggregation (aggr='add') on the MXU.
        acc = acc + jnp.dot(alpha, xh, preferred_element_type=jnp.float32)

    out = acc * (1.0 / HEADS) + bias                              # mean over heads + bias

    # BatchNorm1d, training-mode forward (per-graph batch statistics, biased var).
    mean = jnp.mean(out, axis=0, keepdims=True)
    var  = jnp.mean((out - mean) * (out - mean), axis=0, keepdims=True)
    out  = (out - mean) * lax.rsqrt(var + BN_EPS)
    out  = out * gamma + beta

    out = jnp.maximum(out, 0.0)                                   # ReLU

    # Lane-dense full-tile store: pad channels to 128 lanes, slice in wrapper.
    padded = jnp.concatenate(
        [out, jnp.zeros((n, LANE - C_OUT), jnp.float32)], axis=-1)
    out_ref[0] = padded
    # TODO(synk): BatchNorm running-stat updates (running_mean/var, momentum)
    # are stateful buffers and are not modeled in this forward kernel.


def _pack_params(params):
    """Pack the seven small parameter vectors into one (8,128) f32 slab."""
    pp = jnp.zeros((8, LANE), jnp.float32)
    for h in range(HEADS):
        pp = pp.at[h, 0:2 * C_OUT].set(
            jnp.concatenate([params["att_i"][h], params["att_em_i"][h]]))
        pp = pp.at[HEADS + h, 0:2 * C_OUT].set(
            jnp.concatenate([params["att_j"][h], params["att_em_j"][h]]))
    pp = pp.at[2 * HEADS,     0:C_OUT].set(params["bias"][0])
    pp = pp.at[2 * HEADS + 1, 0:C_OUT].set(params["gamma"][0])
    pp = pp.at[2 * HEADS + 2, 0:C_OUT].set(params["beta"][0])
    return pp


def gnn_layer_forward(x, edge_index, embedding, params):
    """x: [B, N, C_IN] batch of graphs sharing edge_index and embedding."""
    b, n, _ = x.shape

    # --- glue: densify edge_index into adjacency (remove + add self-loops) ---
    src, dst = edge_index[0], edge_index[1]
    adj = jnp.zeros((n, n), jnp.float32).at[dst, src].set(1.0)
    eye = jnp.eye(n, dtype=jnp.float32)
    adj = adj * (1.0 - eye) + eye            # drop original self-loops, add fresh ones

    pp = _pack_params(params)

    out_padded = pl.pallas_call(
        gnn_layer_kernel,
        out_shape=jax.ShapeDtypeStruct((b, n, LANE), jnp.float32),
        grid_spec=pltpu.PrefetchScalarGridSpec(
            num_scalar_prefetch=0,
            grid=(b,),
            in_specs=[
                pl.BlockSpec((1, n, C_IN),          lambda i: (i, 0, 0)),  # x
                pl.BlockSpec((C_IN, HEADS * C_OUT), lambda i: (0, 0)),     # w
                pl.BlockSpec((n, C_OUT),            lambda i: (0, 0)),     # emb
                pl.BlockSpec((8, LANE),             lambda i: (0, 0)),     # param slab
                pl.BlockSpec((n, n),                lambda i: (0, 0)),     # adj
            ],
            out_specs=pl.BlockSpec((1, n, LANE), lambda i: (i, 0, 0)),
        ),
        compiler_params=pltpu.CompilerParams(
            dimension_semantics=("parallel",)),       # megacore sharding on v7x
    )(x, params["w"], embedding, pp, adj)

    return out_padded[:, :, :C_OUT]


# ----------------------------- pure-JAX reference -----------------------------
def gnn_layer_ref(x, edge_index, embedding, params):
    b, n, _ = x.shape
    src, dst = edge_index[0], edge_index[1]
    adj = jnp.zeros((n, n), jnp.float32).at[dst, src].set(1.0)
    eye = jnp.eye(n, dtype=jnp.float32)
    adj = adj * (1.0 - eye) + eye
    outs = []
    for bi in range(b):
        xw = x[bi] @ params["w"]
        acc = jnp.zeros((n, C_OUT), jnp.float32)
        for h in range(HEADS):
            xh = xw[:, h * C_OUT:(h + 1) * C_OUT]
            s_i = xh @ params["att_i"][h] + embedding @ params["att_em_i"][h]
            s_j = xh @ params["att_j"][h] + embedding @ params["att_em_j"][h]
            logits = s_i[:, None] + s_j[None, :]
            logits = jnp.where(logits > 0, logits, NEG_SLOPE * logits)
            logits = jnp.where(adj > 0, logits, -1e30)
            alpha = jax.nn.softmax(logits, axis=-1)
            acc = acc + alpha @ xh
        out = acc / HEADS + params["bias"][0]
        mean = out.mean(0, keepdims=True)
        var = ((out - mean) ** 2).mean(0, keepdims=True)
        out = (out - mean) / jnp.sqrt(var + BN_EPS)
        out = out * params["gamma"][0] + params["beta"][0]
        outs.append(jnp.maximum(out, 0.0))
    return jnp.stack(outs)


def init_params(key):
    ks = jax.random.split(key, 6)
    scale = 0.1
    return {
        # lin: Linear(C_IN, HEADS*C_OUT, bias=False); stored pre-transposed [Cin, H*Cout]
        "w":        scale * jax.random.normal(ks[0], (C_IN, HEADS * C_OUT), jnp.float32),
        "att_i":    scale * jax.random.normal(ks[1], (HEADS, C_OUT), jnp.float32),
        "att_j":    scale * jax.random.normal(ks[2], (HEADS, C_OUT), jnp.float32),
        "att_em_i": scale * jax.random.normal(ks[3], (HEADS, C_OUT), jnp.float32),
        "att_em_j": scale * jax.random.normal(ks[4], (HEADS, C_OUT), jnp.float32),
        "bias":     scale * jax.random.normal(ks[5], (1, C_OUT), jnp.float32),
        # BatchNorm1d defaults
        "gamma":    jnp.ones((1, C_OUT), jnp.float32),
        "beta":     jnp.zeros((1, C_OUT), jnp.float32),
    }


if __name__ == "__main__":
    key = jax.random.PRNGKey(0)
    k_x, k_e, k_p = jax.random.split(key, 3)

    # Batch of node-feature matrices [B, N, C_IN]; shared embeddings [N, C_OUT].
    x = jax.random.normal(k_x, (B_GRAPHS, N_NODES, C_IN), jnp.float32)
    embedding = jax.random.normal(k_e, (N_NODES, C_OUT), jnp.float32)

    # Deterministic sparse graph: node i receives edges from (i+1)%N and (i+3)%N.
    idx = jnp.arange(N_NODES)
    src = jnp.concatenate([(idx + 1) % N_NODES, (idx + 3) % N_NODES])
    dst = jnp.concatenate([idx, idx])
    edge_index = jnp.stack([src, dst]).astype(jnp.int32)   # [2, 2N]

    params = init_params(k_p)

    out = gnn_layer_forward(x, edge_index, embedding, params)
    out = jax.block_until_ready(out)
    assert out.shape == (B_GRAPHS, N_NODES, C_OUT)
    assert bool(jnp.all(jnp.isfinite(out)))

    ref = gnn_layer_ref(x, edge_index, embedding, params)
    assert bool(jnp.allclose(out, ref, atol=1e-2, rtol=1e-2)), "mismatch vs reference"

    print("KERNEL_OK")
</pallas_src>

<mosaic_0001>
module attributes {stable_mosaic.version = 11 : i64} {
  func.func @gnn_layer_kernel(%arg0: i32, %arg1: memref<1x16x8xf32, #tpu.memory_space<vmem>>, %arg2: memref<8x32xf32, #tpu.memory_space<vmem>>, %arg3: memref<16x32xf32, #tpu.memory_space<vmem>>, %arg4: memref<8x128xf32, #tpu.memory_space<vmem>>, %arg5: memref<16x16xf32, #tpu.memory_space<vmem>>, %arg6: memref<1x16x128xf32, #tpu.memory_space<vmem>>) attributes {dimension_semantics = [#tpu.dimension_semantics<parallel>], iteration_bounds = array<i64: 8>, scalar_prefetch = 0 : i64, scratch_operands = 0 : i64, tpu.core_type = #tpu.core_type<tc>, window_params = [{transform_indices = @transform_0, window_bounds = array<i64: 1, 16, 8>}, {pipeline_mode = #tpu.pipeline_mode<synchronous>, transform_indices = @transform_1, window_bounds = array<i64: 8, 32>}, {pipeline_mode = #tpu.pipeline_mode<synchronous>, transform_indices = @transform_2, window_bounds = array<i64: 16, 32>}, {pipeline_mode = #tpu.pipeline_mode<synchronous>, transform_indices = @transform_3, window_bounds = array<i64: 8, 128>}, {pipeline_mode = #tpu.pipeline_mode<synchronous>, transform_indices = @transform_4, window_bounds = array<i64: 16, 16>}, {transform_indices = @transform_5, window_bounds = array<i64: 1, 16, 128>}]} {
    %c0 = arith.constant 0 : index
    %c0_0 = arith.constant 0 : index
    %c0_1 = arith.constant 0 : index
    %0 = vector.load %arg1[%c0, %c0_0, %c0_1] : memref<1x16x8xf32, #tpu.memory_space<vmem>>, vector<1x16x8xf32>
    %1 = vector.shape_cast %0 : vector<1x16x8xf32> to vector<16x8xf32>
    %c0_2 = arith.constant 0 : index
    %c0_3 = arith.constant 0 : index
    %2 = vector.load %arg2[%c0_2, %c0_3] : memref<8x32xf32, #tpu.memory_space<vmem>>, vector<8x32xf32>
    %c0_4 = arith.constant 0 : index
    %c0_5 = arith.constant 0 : index
    %3 = vector.load %arg3[%c0_4, %c0_5] : memref<16x32xf32, #tpu.memory_space<vmem>>, vector<16x32xf32>
    %c0_6 = arith.constant 0 : index
    %c0_7 = arith.constant 0 : index
    %4 = vector.load %arg5[%c0_6, %c0_7] : memref<16x16xf32, #tpu.memory_space<vmem>>, vector<16x16xf32>
    %c0_8 = arith.constant 0 : index
    %c0_9 = arith.constant 0 : index
    %5 = vector.load %arg4[%c0_8, %c0_9] : memref<8x128xf32, #tpu.memory_space<vmem>>, vector<8x128xf32>
    %6 = vector.extract_strided_slice %5 {offsets = [2, 0], sizes = [1, 32], strides = [1, 1]} : vector<8x128xf32> to vector<1x32xf32>
    %7 = vector.extract_strided_slice %5 {offsets = [3, 0], sizes = [1, 32], strides = [1, 1]} : vector<8x128xf32> to vector<1x32xf32>
    %8 = vector.extract_strided_slice %5 {offsets = [4, 0], sizes = [1, 32], strides = [1, 1]} : vector<8x128xf32> to vector<1x32xf32>
    %cst = arith.constant dense<0.000000e+00> : vector<16x32xf32>
    %9 = tpu.matmul %1, %2, %cst {dimension_numbers = #tpu.dot_dimension_numbers<[1], [0], [0], [1], [0, 0, 1, 1], [], []>} : vector<16x8xf32>, vector<8x32xf32>, vector<16x32xf32> -> vector<16x32xf32>
    %cst_10 = arith.constant 0.000000e+00 : f32
    %10 = vector.broadcast %cst_10 : f32 to vector<16x32xf32>
    %11 = tpu.concatenate %9, %3 in 1 : vector<16x32xf32>, vector<16x32xf32> -> vector<16x64xf32>
    %12 = vector.extract_strided_slice %5 {offsets = [0, 0], sizes = [1, 64], strides = [1, 1]} : vector<8x128xf32> to vector<1x64xf32>
    %13 = vector.extract_strided_slice %5 {offsets = [1, 0], sizes = [1, 64], strides = [1, 1]} : vector<8x128xf32> to vector<1x64xf32>
    %cst_11 = arith.constant dense<0.000000e+00> : vector<16x1xf32>
    %14 = tpu.matmul %11, %12, %cst_11 {dimension_numbers = #tpu.dot_dimension_numbers<[1], [1], [0], [0], [0, 0, 1, 0], [], []>} : vector<16x64xf32>, vector<1x64xf32>, vector<16x1xf32> -> vector<16x1xf32>
    %cst_12 = arith.constant dense<0.000000e+00> : vector<1x16xf32>
    %15 = tpu.matmul %13, %11, %cst_12 {dimension_numbers = #tpu.dot_dimension_numbers<[1], [1], [0], [0], [0, 0, 1, 0], [], []>} : vector<1x64xf32>, vector<16x64xf32>, vector<1x16xf32> -> vector<1x16xf32>
    %16 = vector.broadcast %14 : vector<16x1xf32> to vector<16x16xf32>
    %17 = vector.broadcast %15 : vector<1x16xf32> to vector<16x16xf32>
    %18 = arith.addf %16, %17 : vector<16x16xf32>
    %cst_13 = arith.constant 0.000000e+00 : f32
    %19 = vector.broadcast %cst_13 : f32 to vector<16x16xf32>
    %20 = arith.cmpf ogt, %18, %19 : vector<16x16xf32>
    %cst_14 = arith.constant 2.000000e-01 : f32
    %21 = vector.broadcast %cst_14 : f32 to vector<16x16xf32>
    %22 = arith.mulf %21, %18 : vector<16x16xf32>
    %23 = arith.select %20, %18, %22 : vector<16x16xi1>, vector<16x16xf32>
    %cst_15 = arith.constant dense<0xFF800000> : vector<16xf32>
    %24 = vector.multi_reduction <maximumf>, %23, %cst_15 [1] : vector<16x16xf32> to vector<16xf32>
    %25 = vector.shape_cast %24 : vector<16xf32> to vector<16x1xf32>
    %26 = vector.broadcast %25 : vector<16x1xf32> to vector<16x16xf32>
    %27 = arith.subf %23, %26 : vector<16x16xf32>
    %28 = math.exp %27 : vector<16x16xf32>
    %29 = arith.mulf %28, %4 : vector<16x16xf32>
    %cst_16 = arith.constant dense<0.000000e+00> : vector<16xf32>
    %30 = vector.multi_reduction <add>, %29, %cst_16 [1] : vector<16x16xf32> to vector<16xf32>
    %31 = vector.shape_cast %30 : vector<16xf32> to vector<16x1xf32>
    %32 = tpu.reciprocal %31 {approx = true} : vector<16x1xf32> -> vector<16x1xf32>
    %33 = vector.broadcast %32 : vector<16x1xf32> to vector<16x16xf32>
    %34 = arith.mulf %29, %33 : vector<16x16xf32>
    %cst_17 = arith.constant dense<0.000000e+00> : vector<16x32xf32>
    %35 = tpu.matmul %34, %9, %cst_17 {dimension_numbers = #tpu.dot_dimension_numbers<[1], [0], [0], [1], [0, 0, 1, 1], [], []>} : vector<16x16xf32>, vector<16x32xf32>, vector<16x32xf32> -> vector<16x32xf32>
    %36 = arith.addf %10, %35 : vector<16x32xf32>
    %cst_18 = arith.constant 1.000000e+00 : f32
    %37 = vector.broadcast %cst_18 : f32 to vector<16x32xf32>
    %38 = arith.mulf %36, %37 : vector<16x32xf32>
    %39 = vector.broadcast %6 : vector<1x32xf32> to vector<16x32xf32>
    %40 = arith.addf %38, %39 : vector<16x32xf32>
    %cst_19 = arith.constant dense<0.000000e+00> : vector<32xf32>
    %41 = vector.multi_reduction <add>, %40, %cst_19 [0] : vector<16x32xf32> to vector<32xf32>
    %42 = vector.shape_cast %41 : vector<32xf32> to vector<1x32xf32>
    %cst_20 = arith.constant 1.600000e+01 : f32
    %43 = vector.broadcast %cst_20 : f32 to vector<1x32xf32>
    %44 = arith.divf %42, %43 : vector<1x32xf32>
    %45 = vector.broadcast %44 : vector<1x32xf32> to vector<16x32xf32>
    %46 = arith.subf %40, %45 : vector<16x32xf32>
    %47 = vector.broadcast %44 : vector<1x32xf32> to vector<16x32xf32>
    %48 = arith.subf %40, %47 : vector<16x32xf32>
    %49 = arith.mulf %46, %48 : vector<16x32xf32>
    %cst_21 = arith.constant dense<0.000000e+00> : vector<32xf32>
    %50 = vector.multi_reduction <add>, %49, %cst_21 [0] : vector<16x32xf32> to vector<32xf32>
    %51 = vector.shape_cast %50 : vector<32xf32> to vector<1x32xf32>
    %cst_22 = arith.constant 1.600000e+01 : f32
    %52 = vector.broadcast %cst_22 : f32 to vector<1x32xf32>
    %53 = arith.divf %51, %52 : vector<1x32xf32>
    %54 = vector.broadcast %44 : vector<1x32xf32> to vector<16x32xf32>
    %55 = arith.subf %40, %54 : vector<16x32xf32>
    %cst_23 = arith.constant 9.99999974E-6 : f32
    %56 = vector.broadcast %cst_23 : f32 to vector<1x32xf32>
    %57 = arith.addf %53, %56 : vector<1x32xf32>
    %58 = math.rsqrt %57 : vector<1x32xf32>
    %59 = vector.broadcast %58 : vector<1x32xf32> to vector<16x32xf32>
    %60 = arith.mulf %55, %59 : vector<16x32xf32>
    %61 = vector.broadcast %7 : vector<1x32xf32> to vector<16x32xf32>
    %62 = arith.mulf %60, %61 : vector<16x32xf32>
    %63 = vector.broadcast %8 : vector<1x32xf32> to vector<16x32xf32>
    %64 = arith.addf %62, %63 : vector<16x32xf32>
    %cst_24 = arith.constant 0.000000e+00 : f32
    %65 = vector.broadcast %cst_24 : f32 to vector<16x32xf32>
    %66 = arith.maximumf %64, %65 : vector<16x32xf32>
    %cst_25 = arith.constant 0.000000e+00 : f32
    %67 = vector.broadcast %cst_25 : f32 to vector<16x96xf32>
    %68 = tpu.concatenate %66, %67 in 1 : vector<16x32xf32>, vector<16x96xf32> -> vector<16x128xf32>
    %c0_26 = arith.constant 0 : index
    %c0_27 = arith.constant 0 : index
    %c0_28 = arith.constant 0 : index
    %69 = vector.load %arg6[%c0_26, %c0_27, %c0_28] : memref<1x16x128xf32, #tpu.memory_space<vmem>>, vector<1x16x128xf32>
    %70 = vector.shape_cast %69 : vector<1x16x128xf32> to vector<16x128xf32>
    %71 = vector.shape_cast %68 : vector<16x128xf32> to vector<1x16x128xf32>
    tpu.vector_store %arg6[%c0_26, %c0_27, %c0_28], %71 {strides = array<i32>} : memref<1x16x128xf32, #tpu.memory_space<vmem>>, vector<1x16x128xf32>,
    return
  }
  func.func @transform_0(%arg0: i32) -> (i32, i32, i32) {
    %c0_i32 = arith.constant 0 : i32
    %c0_i32_0 = arith.constant 0 : i32
    %c0_i32_1 = arith.constant 0 : i32
    return %arg0, %c0_i32, %c0_i32_0 : i32, i32, i32
  }
  func.func @transform_1(%arg0: i32) -> (i32, i32) {
    %c0_i32 = arith.constant 0 : i32
    %c0_i32_0 = arith.constant 0 : i32
    %c0_i32_1 = arith.constant 0 : i32
    return %c0_i32, %c0_i32_0 : i32, i32
  }
  func.func @transform_2(%arg0: i32) -> (i32, i32) {
    %c0_i32 = arith.constant 0 : i32
    %c0_i32_0 = arith.constant 0 : i32
    %c0_i32_1 = arith.constant 0 : i32
    return %c0_i32, %c0_i32_0 : i32, i32
  }
  func.func @transform_3(%arg0: i32) -> (i32, i32) {
    %c0_i32 = arith.constant 0 : i32
    %c0_i32_0 = arith.constant 0 : i32
    %c0_i32_1 = arith.constant 0 : i32
    return %c0_i32, %c0_i32_0 : i32, i32
  }
  func.func @transform_4(%arg0: i32) -> (i32, i32) {
    %c0_i32 = arith.constant 0 : i32
    %c0_i32_0 = arith.constant 0 : i32
    %c0_i32_1 = arith.constant 0 : i32
    return %c0_i32, %c0_i32_0 : i32, i32
  }
  func.func @transform_5(%arg0: i32) -> (i32, i32, i32) {
    %c0_i32 = arith.constant 0 : i32
    %c0_i32_0 = arith.constant 0 : i32
    %c0_i32_1 = arith.constant 0 : i32
    return %arg0, %c0_i32, %c0_i32_0 : i32, i32, i32
  }
}

</mosaic_0001>

<llo_original>
// kernel: tpu_custom_call.1
$region0: #{tpu_custom_call.1}
  #allocation0 [shape = 'u32[]', space=smem, size = 0x4, offset = 0x4, fixed_abs, tag = 'smem constant byte address 0x4 - core index']
  #allocation1 [shape = 'u32[72,128]{1,0:T(1,128)}', space=vmem, size = 0x9000, scoped, tag = 'internal scratch']
  %s0 = inlined_call_operand.vmem [shape: f32[8,16,8], index: 0, kind: input, shape index: {}]
  %s1 = inlined_call_operand.vmem [shape: f32[8,32], index: 1, kind: input, shape index: {}]
  %s2 = inlined_call_operand.vmem [shape: f32[16,32], index: 2, kind: input, shape index: {}]
  %s3 = inlined_call_operand.vmem [shape: f32[8,128], index: 3, kind: input, shape index: {}]
  %s4 = inlined_call_operand.vmem [shape: f32[16,16], index: 4, kind: input, shape index: {}]
  %s5 = inlined_call_operand.hbm [shape: f32[8,16,128], index: 5, kind: output, shape index: {}]
  %s6 = sld [smem:[#allocation0]]
  $region53: #{tpu_custom_call.1} parent=0
    _
  %s8 = ssub.s32 1, %s6
  %s9 = scalar_select 0, %s8, %s6
  $region1: #{tpu_custom_call.1} parent=0
    #allocation2 [shape = 'u8[16384]{0}', space=vmem, size = 0x4000, scoped, tag = 'output window, operand 0']
    #allocation3 [shape = 's32[2]{0}', space=sflag, size = 0x8, scoped, tag = 'scoped memory for tpu_custom_call.1']
    %10 = vsyncpa [#allocation3], 0
    %s11 = scalar_lea.sflag [#allocation3], 1
    %12 = vsyncpa %s11, 0
    loop: start=0, step=1, limit=10
    $region2: #{tpu_custom_call.1} parent=1 // loop_pre_header
      _
    $region3: #{tpu_custom_call.1} parent=1 // loop_header
      %s14 = sphi 0, %s18
      %p15 = scmp.ge.s32.totalorder %s14, 10
      %s24 = sphi 0, %s26
      %s27 = sphi 0, %s24
      %s28 = sphi 0, %s27
      %s44 = sphi 0, %s28
      %s48 = sphi 0, %s48
      %s50 = sphi 0, %s48
      %s51 = sphi 0, %s50
      %s65 = sphi 0, %s51
      %s69 = sphi 0, %s69
      %s71 = sphi 0, %s69
      %s72 = sphi 0, %s71
      %s86 = sphi 0, %s72
      %s90 = sphi 0, %s90
      %s92 = sphi 0, %s90
      %s93 = sphi 0, %s92
      %s107 = sphi 0, %s93
      %s111 = sphi 0, %s111
      %s113 = sphi 0, %s111
      %s114 = sphi 0, %s113
      %s128 = sphi 0, %s114
      %s134 = sphi 0, %s136
      %s137 = sphi 0, %s134
      %s138 = sphi 0, %s137
      %s154 = sphi 0, %s138
    $region4: #{tpu_custom_call.1} parent=1 // loop_header_branch
      %17 = sbr.rel (%p15) target = $region8
    $region5: #{tpu_custom_call.1} parent=1 // loop_body
      %s19 = ssub.s32 %s14, 1
      %s20 = ssub.s32 %s14, 2
      %s21 = sadd.s32 %s14, 1
      %s22 = ssub.s32 %s14, %s21
      %p23 = scmp.eq.s32.totalorder %s22, 0
      %s25 = sadd.s32 %s24, 1
      %s26 = scalar_select %p23, %s24, %s25
      %p29 = pneg %p23
      %p30 = scmp.eq.s32.totalorder %s14, 7
      %p31 = por %p29, %p30
      %p32 = scmp.ne.s32.totalorder %s24, %s27
      %p33 = scmp.eq.s32.totalorder %s14, 0
      %p34 = por %p32, %p33
      %p35 = scmp.ne.s32.totalorder %s24, %s27
      %p36 = scmp.eq.s32.totalorder %s19, 7
      %p37 = por %p35, %p36
      %p38 = scmp.ne.s32.totalorder %s27, %s28
      %p39 = scmp.eq.s32.totalorder %s19, 0
      %p40 = por %p38, %p39
      %p41 = scmp.ne.s32.totalorder %s27, %s28
      %p42 = scmp.eq.s32.totalorder %s20, 7
      %p43 = por %p41, %p42
      %p45 = scmp.ne.s32.totalorder %s28, %s44
      %p46 = scmp.eq.s32.totalorder %s20, 0
      %p47 = por %p45, %p46
      %s49 = sadd.s32 %s48, 1
      %p52 = scmp.eq.s32.totalorder %s14, 7
      %p53 = scmp.ne.s32.totalorder %s48, %s50
      %p54 = scmp.eq.s32.totalorder %s14, 0
      %p55 = por %p53, %p54
      %p56 = scmp.ne.s32.totalorder %s48, %s50
      %p57 = scmp.eq.s32.totalorder %s19, 7
      %p58 = por %p56, %p57
      %p59 = scmp.ne.s32.totalorder %s50, %s51
      %p60 = scmp.eq.s32.totalorder %s19, 0
      %p61 = por %p59, %p60
      %p62 = scmp.ne.s32.totalorder %s50, %s51
      %p63 = scmp.eq.s32.totalorder %s20, 7
      %p64 = por %p62, %p63
      %p66 = scmp.ne.s32.totalorder %s51, %s65
      %p67 = scmp.eq.s32.totalorder %s20, 0
      %p68 = por %p66, %p67
      %s70 = sadd.s32 %s69, 1
      %p73 = scmp.eq.s32.totalorder %s14, 7
      %p74 = scmp.ne.s32.totalorder %s69, %s71
      %p75 = scmp.eq.s32.totalorder %s14, 0
      %p76 = por %p74, %p75
      %p77 = scmp.ne.s32.totalorder %s69, %s71
      %p78 = scmp.eq.s32.totalorder %s19, 7
      %p79 = por %p77, %p78
      %p80 = scmp.ne.s32.totalorder %s71, %s72
      %p81 = scmp.eq.s32.totalorder %s19, 0
      %p82 = por %p80, %p81
      %p83 = scmp.ne.s32.totalorder %s71, %s72
      %p84 = scmp.eq.s32.totalorder %s20, 7
      %p85 = por %p83, %p84
      %p87 = scmp.ne.s32.totalorder %s72, %s86
      %p88 = scmp.eq.s32.totalorder %s20, 0
      %p89 = por %p87, %p88
      %s91 = sadd.s32 %s90, 1
      %p94 = scmp.eq.s32.totalorder %s14, 7
      %p95 = scmp.ne.s32.totalorder %s90, %s92
      %p96 = scmp.eq.s32.totalorder %s14, 0
      %p97 = por %p95, %p96
      %p98 = scmp.ne.s32.totalorder %s90, %s92
      %p99 = scmp.eq.s32.totalorder %s19, 7
      %p100 = por %p98, %p99
      %p101 = scmp.ne.s32.totalorder %s92, %s93
      %p102 = scmp.eq.s32.totalorder %s19, 0
      %p103 = por %p101, %p102
      %p104 = scmp.ne.s32.totalorder %s92, %s93
      %p105 = scmp.eq.s32.totalorder %s20, 7
      %p106 = por %p104, %p105
      %p108 = scmp.ne.s32.totalorder %s93, %s107
      %p109 = scmp.eq.s32.totalorder %s20, 0
      %p110 = por %p108, %p109
      %s112 = sadd.s32 %s111, 1
      %p115 = scmp.eq.s32.totalorder %s14, 7
      %p116 = scmp.ne.s32.totalorder %s111, %s113
      %p117 = scmp.eq.s32.totalorder %s14, 0
      %p118 = por %p116, %p117
      %p119 = scmp.ne.s32.totalorder %s111, %s113
      %p120 = scmp.eq.s32.totalorder %s19, 7
      %p121 = por %p119, %p120
      %p122 = scmp.ne.s32.totalorder %s113, %s114
      %p123 = scmp.eq.s32.totalorder %s19, 0
      %p124 = por %p122, %p123
      %p125 = scmp.ne.s32.totalorder %s113, %s114
      %p126 = scmp.eq.s32.totalorder %s20, 7
      %p127 = por %p125, %p126
      %p129 = scmp.ne.s32.totalorder %s114, %s128
      %p130 = scmp.eq.s32.totalorder %s20, 0
      %p131 = por %p129, %p130
      %s132 = ssub.s32 %s14, %s21
      %p133 = scmp.eq.s32.totalorder %s132, 0
      %s135 = sadd.s32 %s134, 1
      %s136 = scalar_select %p133, %s134, %s135
      %p139 = pneg %p133
      %p140 = scmp.eq.s32.totalorder %s14, 7
      %p141 = por %p139, %p140
      %p142 = scmp.ne.s32.totalorder %s134, %s137
      %p143 = scmp.eq.s32.totalorder %s14, 0
      %p144 = por %p142, %p143
      %p145 = scmp.ne.s32.totalorder %s134, %s137
      %p146 = scmp.eq.s32.totalorder %s19, 7
      %p147 = por %p145, %p146
      %p148 = scmp.ne.s32.totalorder %s137, %s138
      %p149 = scmp.eq.s32.totalorder %s19, 0
      %p150 = por %p148, %p149
      %p151 = scmp.ne.s32.totalorder %s137, %s138
      %p152 = scmp.eq.s32.totalorder %s20, 7
      %p153 = por %p151, %p152
      %p155 = scmp.ne.s32.totalorder %s138, %s154
      %p156 = scmp.eq.s32.totalorder %s20, 0
      %p157 = por %p155, %p156
      %p158 = scmp.le.s32.totalorder 1, %s14
      %p159 = scmp.lt.s32.totalorder %s14, 9
      %p160 = pnand %p158, %p159
      %p161 = pneg %p160
      // Predicated region
      $region9: #{tpu_custom_call.1} parent=5 // pred_check
        _
      $region10: #{tpu_custom_call.1} parent=5 // pred_check_branch
        %163 = sbr.rel (%p160) target = $region12
      $region11: #{tpu_custom_call.1} parent=5 // pred_region
        %s164 = ssub.s32 %s14, 1
        // Predicated region
        $region13: #{tpu_custom_call.1} parent=11 // pred_check
          %p165 = pneg %p61
        $region14: #{tpu_custom_call.1} parent=11 // pred_check_branch
          %167 = sbr.rel (%p165) target = $region16
        $region15: #{tpu_custom_call.1} parent=11 // pred_region
          _
        $region16: #{tpu_custom_call.1} parent=11 // pred_fallthru
          _
        // Predicated region
        $region17: #{tpu_custom_call.1} parent=11 // pred_check
          %p168 = pneg %p82
        $region18: #{tpu_custom_call.1} parent=11 // pred_check_branch
          %170 = sbr.rel (%p168) target = $region20
        $region19: #{tpu_custom_call.1} parent=11 // pred_region
          _
        $region20: #{tpu_custom_call.1} parent=11 // pred_fallthru
          _
        // Predicated region
        $region21: #{tpu_custom_call.1} parent=11 // pred_check
          %p171 = pneg %p103
        $region22: #{tpu_custom_call.1} parent=11 // pred_check_branch
          %173 = sbr.rel (%p171) target = $region24
        $region23: #{tpu_custom_call.1} parent=11 // pred_region
          _
        $region24: #{tpu_custom_call.1} parent=11 // pred_fallthru
          _
        // Predicated region
        $region25: #{tpu_custom_call.1} parent=11 // pred_check
          %p174 = pneg %p124
        $region26: #{tpu_custom_call.1} parent=11 // pred_check_branch
          %176 = sbr.rel (%p174) target = $region28
        $region27: #{tpu_custom_call.1} parent=11 // pred_region
          _
        $region28: #{tpu_custom_call.1} parent=11 // pred_fallthru
          _
      $region12: #{tpu_custom_call.1} parent=5 // pred_fallthru
        _
      %p177 = scmp.lt.s32.totalorder %s14, 8
      // Predicated region
      $region29: #{tpu_custom_call.1} parent=5 // pred_check
        %p178 = pneg %p177
      $region30: #{tpu_custom_call.1} parent=5 // pred_check_branch
        %180 = sbr.rel (%p178) target = $region32
      $region31: #{tpu_custom_call.1} parent=5 // pred_region
        // Predicated region
        $region33: #{tpu_custom_call.1} parent=31 // pred_check
          %p181 = pneg %p34
        $region34: #{tpu_custom_call.1} parent=31 // pred_check_branch
          %183 = sbr.rel (%p181) target = $region36
        $region35: #{tpu_custom_call.1} parent=31 // pred_region
          %p184 = scmp.lt.s32.totalorder %s14, 7
          %s185 = scalar_select %p184, %s14, 7
          %s186 = smul.addr %s185, 2
          %s187 = smul.addr %s186, 8
          %s188 = scalar_lea.vmem %s0, %s187
        $region36: #{tpu_custom_call.1} parent=31 // pred_fallthru
          _
      $region32: #{tpu_custom_call.1} parent=5 // pred_fallthru
        _
      %p189 = scmp.le.s32.totalorder 1, %s14
      %p190 = scmp.lt.s32.totalorder %s14, 9
      %p191 = pnand %p189, %p190
      %p192 = pneg %p191
      // Predicated region
      $region37: #{tpu_custom_call.1} parent=5 // pred_check
        _
      $region38: #{tpu_custom_call.1} parent=5 // pred_check_branch
        %194 = sbr.rel (%p191) target = $region40
      $region39: #{tpu_custom_call.1} parent=5 // pred_region
        %s195 = ssub.s32 %s14, 1
        %p196 = scmp.lt.s32.totalorder %s19, 7
        %s197 = scalar_select %p196, %s19, 7
        %s198 = smul.addr %s197, 2
        %s199 = smul.addr %s198, 8
        %s200 = scalar_lea.vmem %s0, %s199
        %p201 = pneg %p40
        %p202 = pneg %p37
        %p203 = pneg %p61
        %p204 = pneg %p58
        %p205 = pneg %p82
        %p206 = pneg %p79
        %p207 = pneg %p103
        %p208 = pneg %p100
        %p209 = pneg %p124
        %p210 = pneg %p121
        %p211 = pneg %p150
        %p212 = pneg %p147
        %s213 = sand.u32 %s137, 1
        %s214 = scalar_lea.sflag [#allocation3], %s213
        %s215 = sand.u32 %s137, 1
        %s216 = smul.addr %s215, 16
        %s217 = scalar_lea.vmem [#allocation2], %s216
        %p218 = scmp.lt.s32.totalorder %s19, 7
        %s219 = scalar_select %p218, %s19, 7
        %s220 = smul.addr %s219, 2
        %s221 = smul.addr %s220, 8
        %s222 = scalar_lea.vmem %s0, %s221
        %v223 = vld [vmem:[%s222] sm:$0xff]
        %v224 = vld [vmem:[%s222 + $0x8] sm:$0xff]
        %v225 = vld [vmem:[%s1] sm:$0xff]
        %v226 = vld [vmem:[%s2] sm:$0xff]
        %v227 = vld [vmem:[%s2 + $0x8] sm:$0xff]
        %v228 = vld [vmem:[%s4] sm:$0xff]
        %v229 = vld [vmem:[%s4 + $0x8] sm:$0xff]
        %v230 = vld [vmem:[%s3] sm:$0xff]
        %vm231 = vcmask 64512
        %v233 = vsel %vm231, %v223, 0
        %v236 = vsel %vm231, %v224, 0
        %238 = vmatpush.msra.mxu0 0.0
        %239 = vmatpush.msra.mxu0 0.0
        %240 = vmatpush.msra.mxu0 0.0
        %241 = vmatpush.msra.mxu0 0.0
        %242 = vmatpush.msra.mxu0 0.0
        %243 = vmatpush.msra.mxu0 0.0
        %244 = vmatpush.msra.mxu0 0.0
        %245 = vmatpush.msra.mxu0 0.0
        %246 = vmatpush.msra.mxu0 0.0
        %247 = vmatpush.msra.mxu0 0.0
        %248 = vmatpush.msra.mxu0 0.0
        %249 = vmatpush.msra.mxu0 0.0
        %250 = vmatpush.msra.mxu0 0.0
        %251 = vmatpush.msra.mxu0 0.0
        %252 = vmatpush.msra.mxu0 0.0
        %253 = vmatpush.msra.mxu0 %v225
        %254 = vmatmul.f32.gmra.mxu0 %v233
        %v255 = vpop.f32.mrf.mxu0
        %v256 = vadd.f32 0.0, %v255
        %257 = vmatmul.f32.gmra.mxu0 %v236
        %v258 = vpop.f32.mrf.mxu0
        %v259 = vadd.f32 0.0, %v258
        %260 = vdwg.mxu0
        %263 = vrot.lane.b32.xlu0 %v226, 32
        %v264 = vpop.permute.xlu0 %263
        %265 = vrot.lane.b32.xlu0 %v227, 32
        %v266 = vpop.permute.xlu0 %265
        %vm269 = vcmask 261120
        %v270 = vsel %vm269, %v256, %v264
        %v271 = vsel %vm269, %v259, %v266
        %v272 = vperm.slane %v230, 0
        %v273 = vmul.f32 %v270, %v272
        %v274 = vmul.f32 %v271, %v272
        %vm275 = vcmask 523264
        %v276 = vsel %vm275, %v273, 0.0
        %277 = vadd.xlane.f32.xlu0 %v276
        %v278 = vpop.xlane.xlu0 %277
        %v279 = vsel %vm275, %v274, 0.0
        %280 = vadd.xlane.f32.xlu0 %v279
        %v281 = vpop.xlane.xlu0 %280
        %v283 = vrot.slane %v230, 1
        %v284 = vsel %vm275, %v283, 0
        %v287 = vsel %vm275, %v270, 0
        %v290 = vsel %vm275, %v271, 0
        %292 = vmatpush.xpose.msra.mxu0 0.0
        %293 = vmatpush.xpose.msra.mxu0 0.0
        %294 = vmatpush.xpose.msra.mxu0 0.0
        %295 = vmatpush.xpose.msra.mxu0 0.0
        %296 = vmatpush.xpose.msra.mxu0 0.0
        %297 = vmatpush.xpose.msra.mxu0 0.0
        %298 = vmatpush.xpose.msra.mxu0 0.0
        %299 = vmatpush.xpose.msra.mxu0 0.0
        %300 = vmatpush.xpose.msra.mxu0 0.0
        %301 = vmatpush.xpose.msra.mxu0 0.0
        %302 = vmatpush.xpose.msra.mxu0 0.0
        %303 = vmatpush.xpose.msra.mxu0 0.0
        %304 = vmatpush.xpose.msra.mxu0 0.0
        %305 = vmatpush.xpose.msra.mxu0 0.0
        %306 = vmatpush.xpose.msra.mxu0 %v290
        %307 = vmatpush.xpose.msra.mxu0 %v287
        %308 = vmatmul.f32.gmra.mxu0 %v284
        %v309 = vpop.f32.mrf.mxu0
        %v310 = vadd.f32 0.0, %v309
        %311 = vdwg.mxu0
        %v312 = vperm.slane %v310, 0
        %v313 = vadd.f32 %v278, %v312
        %v314 = vadd.f32 %v281, %v312
        %vm315 = vcmp.gt.f32.partialorder %v313, 0.0
        %vm316 = vcmp.gt.f32.partialorder %v314, 0.0
        %v317 = vmul.f32 %v313, 0.2
        %v318 = vmul.f32 %v314, 0.2
        %v319 = vsel %vm315, %v313, %v317
        %v320 = vsel %vm316, %v314, %v318
        %vm321 = vcmask 130048
        %v322 = vsel %vm321, %v319, -inf
        %323 = vmax.xlane.f32.xlu0 %v322
        %v324 = vpop.xlane.xlu0 %323
        %v325 = vsel %vm321, %v320, -inf
        %326 = vmax.xlane.f32.xlu0 %v325
        %v327 = vpop.xlane.xlu0 %326
        %v328 = vsub.f32 %v319, %v324
        %v329 = vsub.f32 %v320, %v327
        %v330 = vmul.f32 %v328, 1.442695
        %v331 = vpow.pop %v330
        %v332 = vmul.f32 %v329, 1.442695
        %v333 = vpow.pop %v332
        %v334 = vmul.f32 %v331, %v228
        %v335 = vmul.f32 %v333, %v229
        %v336 = vsel %vm321, %v334, 0.0
        %337 = vadd.xlane.f32.xlu0 %v336
        %v338 = vpop.xlane.xlu0 %337
        %v339 = vsel %vm321, %v335, 0.0
        %340 = vadd.xlane.f32.xlu0 %v339
        %v341 = vpop.xlane.xlu0 %340
        %v342 = vrcp.pop %v338
        %v343 = vrcp.pop %v341
        %v344 = vmul.f32 %v334, %v342
        %v345 = vmul.f32 %v335, %v343
        %v346 = vperm.slane %v230, 2
        %v348 = vsel %vm321, %v344, 0
        %v351 = vsel %vm321, %v345, 0
        %353 = vmatpush.msra.mxu0 0.0
        %354 = vmatpush.msra.mxu0 0.0
        %355 = vmatpush.msra.mxu0 0.0
        %356 = vmatpush.msra.mxu0 0.0
        %357 = vmatpush.msra.mxu0 0.0
        %358 = vmatpush.msra.mxu0 0.0
        %359 = vmatpush.msra.mxu0 0.0
        %360 = vmatpush.msra.mxu0 0.0
        %361 = vmatpush.msra.mxu0 0.0
        %362 = vmatpush.msra.mxu0 0.0
        %363 = vmatpush.msra.mxu0 0.0
        %364 = vmatpush.msra.mxu0 0.0
        %365 = vmatpush.msra.mxu0 0.0
        %366 = vmatpush.msra.mxu0 0.0
        %367 = vmatpush.msra.mxu0 %v259
        %368 = vmatpush.msra.mxu0 %v256
        %369 = vmatmul.f32.gmra.mxu0 %v348
        %v370 = vpop.f32.mrf.mxu0
        %v371 = vadd.f32 %v346, %v370
        %372 = vmatmul.f32.gmra.mxu0 %v351
        %v373 = vpop.f32.mrf.mxu0
        %v374 = vadd.f32 %v346, %v373
        %375 = vdwg.mxu0
        %v376 = vsel %vm269, %v371, 0.0
        %v377 = vsel %vm269, %v374, 0.0
        %v378 = vadd.f32 %v376, %v377
        %v379 = vrot.slane %v378, 4
        %v380 = vadd.f32 %v378, %v379
        %v381 = vrot.slane %v380, 2
        %v382 = vadd.f32 %v380, %v381
        %v383 = vrot.slane %v382, 1
        %v384 = vadd.f32 %v382, %v383
        %v385 = vrcp.pop 16.0
        %v386 = vmul.f32 16.0, %v385
        %v387 = vsub.f32 1.0, %v386
        %v388 = vmul.f32 %v385, %v387
        %v389 = vadd.f32 %v385, %v388
        %vm390 = vweird.f32 %v385
        %v391 = vsel %vm390, %v385, %v389
        %v392 = vmul.f32 %v384, %v391
        %v393 = vsub.f32 %v371, %v392
        %v394 = vsub.f32 %v374, %v392
        %v395 = vmul.f32 %v393, %v393
        %v396 = vmul.f32 %v394, %v394
        %v397 = vsel %vm269, %v395, 0.0
        %v398 = vsel %vm269, %v396, 0.0
        %v399 = vadd.f32 %v397, %v398
        %v400 = vrot.slane %v399, 4
        %v401 = vadd.f32 %v399, %v400
        %v402 = vrot.slane %v401, 2
        %v403 = vadd.f32 %v401, %v402
        %v404 = vrot.slane %v403, 1
        %v405 = vadd.f32 %v403, %v404
        %v406 = vmul.f32 %v405, %v391
        %v407 = vadd.f32 %v406, 1e-05
        %v408 = vrsqrt.pop %v407
        %v409 = vmul.f32 %v408, %v407
        %v410 = vmul.f32 %v409, %v408
        %v411 = vmul.f32 0.5, %v410
        %v412 = vsub.f32 1.5, %v411
        %v413 = vmul.f32 %v408, %v412
        %vm414 = vweird.f32 %v407
        %vm415 = vweird.f32 %v408
        %vm416 = vmor %vm414, %vm415
        %v417 = vsel %vm416, %v408, %v413
        %v418 = vmul.f32 %v393, %v417
        %v419 = vmul.f32 %v394, %v417
        %v420 = vperm.slane %v230, 3
        %v421 = vmul.f32 %v418, %v420
        %v422 = vmul.f32 %v419, %v420
        %v423 = vperm.slane %v230, 4
        %v424 = vadd.f32 %v421, %v423
        %v425 = vadd.f32 %v422, %v423
        %v426 = vmax.f32 %v424, 0.0
        %v427 = vmax.f32 %v425, 0.0
        %v428 = vsel %vm269, %v426, 0.0
        %v429 = vsel %vm269, %v427, 0.0
        %430 = vst [vmem:[%s217] sm:$0xff] %v428
        %431 = vst [vmem:[%s217 + $0x8] sm:$0xff] %v429
        %s432 = sand.u32 %s137, 1
        %s433 = scalar_lea.sflag [#allocation3], %s432
        %s434 = sand.u32 %s137, 1
        %s435 = smul.addr %s434, 16
        %s436 = scalar_lea.vmem [#allocation2], %s435
        // Predicated region
        $region41: #{tpu_custom_call.1} parent=39 // pred_check
          %p437 = pneg %p147
        $region42: #{tpu_custom_call.1} parent=39 // pred_check_branch
          %439 = sbr.rel (%p437) target = $region44
        $region43: #{tpu_custom_call.1} parent=39 // pred_region
          %441 = vsyncadd %s433, 0
          %s442 = smul.addr %s19, 2
          %s443 = smul.addr %s442, 8
          %s444 = scalar_lea.hbm %s5, %s443
          %s445 = sshll.u32 %s436, 4
          %s446 = int_to_ptr.vmem [resolvable:$true] %s445
          %s447 = sshll.u32 %s444, 4
          %s448 = int_to_ptr.hbm [resolvable:$true] %s447
          %453 = dma.vmem_to_hbm [thread:$0]  %s446, 256, %s448, %s433, 128, 128, 8
        $region44: #{tpu_custom_call.1} parent=39 // pred_fallthru
          _
      $region40: #{tpu_custom_call.1} parent=5 // pred_fallthru
        _
      %p454 = scmp.le.s32.totalorder 2, %s14
      // Predicated region
      $region45: #{tpu_custom_call.1} parent=5 // pred_check
        %p455 = pneg %p454
      $region46: #{tpu_custom_call.1} parent=5 // pred_check_branch
        %457 = sbr.rel (%p455) target = $region48
      $region47: #{tpu_custom_call.1} parent=5 // pred_region
        %s458 = ssub.s32 %s14, 2
        // Predicated region
        $region49: #{tpu_custom_call.1} parent=47 // pred_check
          %p459 = pneg %p153
        $region50: #{tpu_custom_call.1} parent=47 // pred_check_branch
          %461 = sbr.rel (%p459) target = $region52
        $region51: #{tpu_custom_call.1} parent=47 // pred_region
          %s462 = sand.u32 %s138, 1
          %s463 = scalar_lea.sflag [#allocation3], %s462
          %s464 = sand.u32 %s138, 1
          %s465 = smul.addr %s464, 16
          %s466 = scalar_lea.vmem [#allocation2], %s465
          %468 = dma.done %s463, 256
        $region52: #{tpu_custom_call.1} parent=47 // pred_fallthru
          _
      $region48: #{tpu_custom_call.1} parent=5 // pred_fallthru
        _
    $region6: #{tpu_custom_call.1} parent=1 // loop_footer
      %s18 = sadd.s32 1, %s14
    $region7: #{tpu_custom_call.1} parent=1 // loop_footer_branch
      %13 = sbr.rel target = $region3
    $region8: #{tpu_custom_call.1} parent=1 // loop_exit
      _
    %469 = vsyncpa [#allocation3], 1
    %s470 = scalar_lea.sflag [#allocation3], 1
    %471 = vsyncpa %s470, 1

</llo_original>
